<compile_context>
chip_gen: v5e
topology: v5e:2x2
jax: 0.10.0
libtpu: 0.0.40
codegen_flags: <defaults>
</compile_context>

<pallas_src>
import jax
import jax.numpy as jnp
from jax import lax
from jax.experimental import pallas as pl
from jax.experimental.pallas import tpu as pltpu


def _round_up(n, m):
    return pl.cdiv(n, m) * m


def make_mlp_kernel(H1, H2, off_b1, off_b2, off_w3, off_b3):
    def mlp_kernel(x_ref, w1_ref, w2_ref, pk_ref, o_ref):
        # x: [block_b, F] f32 (cast to bf16 in-register), W1/W2 in PyTorch
        # [out, in] layout (bf16), pk: packed f32 slab of b1|b2|w3col|b3.
        x_bf = x_ref[...].astype(jnp.bfloat16)

        # layer 1: h1 = relu(W1 @ x^T + b1)   -> [H1, block_b] f32
        h1 = lax.dot_general(
            w1_ref[...], x_bf,
            dimension_numbers=(((1,), (1,)), ((), ())),   # contract on F
            preferred_element_type=jnp.float32)
        b1 = pk_ref[off_b1:off_b1 + H1, :]
        h1 = jnp.maximum(h1 + b1, 0.0)

        # layer 2: h2 = relu(W2 @ h1 + b2)    -> [H2, block_b] f32
        h2 = jnp.dot(w2_ref[...], h1.astype(jnp.bfloat16),
                     preferred_element_type=jnp.float32)
        b2 = pk_ref[off_b2:off_b2 + H2, :]
        h2 = jnp.maximum(h2 + b2, 0.0)

        # layer 3 (N=1): VPU multiply + sublane reduce, lane-dense [1, block_b]
        w3 = pk_ref[off_w3:off_w3 + H2, :]
        b3 = pk_ref[off_b3:off_b3 + 1, :]
        z = jnp.sum(h2 * w3, axis=0, keepdims=True) + b3
        o_ref[...] = jax.nn.sigmoid(z)

    return mlp_kernel


def prepare_params(params):
    """Pack params for the kernel: bf16 W1/W2 + one f32 slab for b1|b2|w3|b3."""
    w1, b1, w2, b2, w3, b3 = params   # PyTorch [out, in] layout, f32
    H1, H2 = w1.shape[0], w2.shape[0]
    H1p, H2p = _round_up(H1, 8), _round_up(H2, 8)
    off_b1, off_b2 = 0, H1p
    off_w3, off_b3 = H1p + H2p, H1p + 2 * H2p
    P = _round_up(off_b3 + 1, 8)

    packed = jnp.zeros((P, 1), jnp.float32)
    packed = packed.at[off_b1:off_b1 + H1].set(b1.reshape(H1, 1))
    packed = packed.at[off_b2:off_b2 + H2].set(b2.reshape(H2, 1))
    packed = packed.at[off_w3:off_w3 + H2].set(w3.reshape(H2, 1))  # w3 column
    packed = packed.at[off_b3:off_b3 + 1].set(b3.reshape(1, 1))

    meta = (H1, H2, off_b1, off_b2, off_w3, off_b3)
    return w1.astype(jnp.bfloat16), w2.astype(jnp.bfloat16), packed, meta


def net_forward(x, params, *, block_b=None):
    """Pallas forward of Net.  x: [B, F] float32 -> [B, 1] float32."""
    B, F = x.shape
    w1b, w2b, packed, (H1, H2, ob1, ob2, ow3, ob3) = prepare_params(params)
    P = packed.shape[0]

    # Batch tile: aim for a 2-step grid (keeps both v7x TCs busy) while
    # amortizing per-step overhead; cap so VMEM stays tiny on every chip.
    if block_b is None:
        block_b = min(4096, max(128, _round_up(pl.cdiv(B, 2), 128)))
    else:
        block_b = max(128, _round_up(block_b, 128))
    B_pad = _round_up(B, block_b)
    xp = x if B_pad == B else jnp.pad(x, ((0, B_pad - B), (0, 0)))

    grid = (B_pad // block_b,)
    resident = lambda shape: pl.BlockSpec(shape, lambda i: (0, 0))

    outT = pl.pallas_call(
        make_mlp_kernel(H1, H2, ob1, ob2, ow3, ob3),
        out_shape=jax.ShapeDtypeStruct((1, B_pad), jnp.float32),
        grid_spec=pltpu.PrefetchScalarGridSpec(
            num_scalar_prefetch=0,
            grid=grid,
            in_specs=[
                pl.BlockSpec((block_b, F), lambda i: (i, 0)),  # x (f32, streamed)
                resident((H1, F)),    # W1 (bf16, VMEM-resident)
                resident((H2, H1)),   # W2 (bf16, VMEM-resident)
                resident((P, 1)),     # packed f32: b1 | b2 | w3 col | b3
            ],
            out_specs=pl.BlockSpec((1, block_b), lambda i: (0, i)),
        ),
        compiler_params=pltpu.CompilerParams(
            dimension_semantics=("parallel",),
        ),
    )(xp, w1b, w2b, packed)

    return jnp.transpose(outT[:, :B])                    # [B, 1]


def init_params(key, n_features):
    """Deterministic init mimicking nn.Linear (uniform +/- 1/sqrt(fan_in)).
    Weights in PyTorch [out, in] layout, biases [out], all f32."""
    h1, h2 = n_features // 2, n_features // 4
    dims = [(n_features, h1), (h1, h2), (h2, 1)]
    params = []
    for fan_in, fan_out in dims:
        key, kw, kb = jax.random.split(key, 3)
        bound = 1.0 / (fan_in ** 0.5)
        w = jax.random.uniform(kw, (fan_out, fan_in), jnp.float32, -bound, bound)
        b = jax.random.uniform(kb, (fan_out,), jnp.float32, -bound, bound)
        params += [w, b]
    return tuple(params)


def reference_forward(x, params):
    """Pure-JAX reference using the same dtype path as the kernel
    (bf16 MXU operands, f32 accumulation / epilogue)."""
    w1, b1, w2, b2, w3, b3 = params
    xb = x.astype(jnp.bfloat16)
    h1 = jnp.maximum(
        jnp.dot(xb, w1.astype(jnp.bfloat16).T,
                preferred_element_type=jnp.float32) + b1, 0.0)
    h2 = jnp.maximum(
        jnp.dot(h1.astype(jnp.bfloat16), w2.astype(jnp.bfloat16).T,
                preferred_element_type=jnp.float32) + b2, 0.0)
    z = jnp.dot(h2, w3.T) + b3
    return jax.nn.sigmoid(z)


if __name__ == "__main__":
    key = jax.random.PRNGKey(0)
    n_features = 64     # stand-in for len(features) in the original script
    batch = 256         # small; gives a 2-step grid at block_b=128

    kx, kp = jax.random.split(key)
    x = jax.random.uniform(kx, (batch, n_features), jnp.float32)
    params = init_params(kp, n_features)

    out = net_forward(x, params)
    out = jax.block_until_ready(out)

    ref = reference_forward(x, params)
    assert out.shape == (batch, 1)
    assert jnp.allclose(out, ref, atol=1e-4, rtol=1e-4), (
        float(jnp.max(jnp.abs(out - ref))))

    # TODO(synk): dataset/feature-list file loading and the training loop from
    # the original script are host-side I/O / optimizer code and are not
    # reproduced here (forward pass only).
    print("KERNEL_OK")
</pallas_src>

<mosaic_0001>
module attributes {stable_mosaic.version = 11 : i64} {
  func.func @mlp_kernel(%arg0: i32, %arg1: memref<128x64xf32, #tpu.memory_space<vmem>>, %arg2: memref<32x64xbf16, #tpu.memory_space<vmem>>, %arg3: memref<16x32xbf16, #tpu.memory_space<vmem>>, %arg4: memref<72x1xf32, #tpu.memory_space<vmem>>, %arg5: memref<1x128xf32, #tpu.memory_space<vmem>>) attributes {dimension_semantics = [#tpu.dimension_semantics<parallel>], iteration_bounds = array<i64: 2>, scalar_prefetch = 0 : i64, scratch_operands = 0 : i64, tpu.core_type = #tpu.core_type<tc>, window_params = [{transform_indices = @transform_0, window_bounds = array<i64: 128, 64>}, {pipeline_mode = #tpu.pipeline_mode<synchronous>, transform_indices = @transform_1, window_bounds = array<i64: 32, 64>}, {pipeline_mode = #tpu.pipeline_mode<synchronous>, transform_indices = @transform_2, window_bounds = array<i64: 16, 32>}, {pipeline_mode = #tpu.pipeline_mode<synchronous>, transform_indices = @transform_3, window_bounds = array<i64: 72, 1>}, {transform_indices = @transform_4, window_bounds = array<i64: 1, 128>}]} {
    %c0 = arith.constant 0 : index
    %c0_0 = arith.constant 0 : index
    %0 = vector.load %arg1[%c0, %c0_0] : memref<128x64xf32, #tpu.memory_space<vmem>>, vector<128x64xf32>
    %1 = arith.truncf %0 : vector<128x64xf32> to vector<128x64xbf16>
    %c0_1 = arith.constant 0 : index
    %c0_2 = arith.constant 0 : index
    %2 = vector.load %arg2[%c0_1, %c0_2] : memref<32x64xbf16, #tpu.memory_space<vmem>>, vector<32x64xbf16>
    %cst = arith.constant dense<0.000000e+00> : vector<32x128xf32>
    %3 = tpu.matmul %2, %1, %cst {dimension_numbers = #tpu.dot_dimension_numbers<[1], [1], [0], [0], [0, 0, 1, 0], [], []>} : vector<32x64xbf16>, vector<128x64xbf16>, vector<32x128xf32> -> vector<32x128xf32>
    %c0_3 = arith.constant 0 : index
    %c0_4 = arith.constant 0 : index
    %4 = vector.load %arg4[%c0_3, %c0_4] : memref<72x1xf32, #tpu.memory_space<vmem>>, vector<32x1xf32>
    %5 = vector.broadcast %4 : vector<32x1xf32> to vector<32x128xf32>
    %6 = arith.addf %3, %5 : vector<32x128xf32>
    %cst_5 = arith.constant 0.000000e+00 : f32
    %7 = vector.broadcast %cst_5 : f32 to vector<32x128xf32>
    %8 = arith.maximumf %6, %7 : vector<32x128xf32>
    %c0_6 = arith.constant 0 : index
    %c0_7 = arith.constant 0 : index
    %9 = vector.load %arg3[%c0_6, %c0_7] : memref<16x32xbf16, #tpu.memory_space<vmem>>, vector<16x32xbf16>
    %10 = arith.truncf %8 : vector<32x128xf32> to vector<32x128xbf16>
    %cst_8 = arith.constant dense<0.000000e+00> : vector<16x128xf32>
    %11 = tpu.matmul %9, %10, %cst_8 {dimension_numbers = #tpu.dot_dimension_numbers<[1], [0], [0], [1], [0, 0, 1, 1], [], []>} : vector<16x32xbf16>, vector<32x128xbf16>, vector<16x128xf32> -> vector<16x128xf32>
    %c32 = arith.constant 32 : index
    %c0_9 = arith.constant 0 : index
    %12 = vector.load %arg4[%c32, %c0_9] : memref<72x1xf32, #tpu.memory_space<vmem>>, vector<16x1xf32>
    %13 = vector.broadcast %12 : vector<16x1xf32> to vector<16x128xf32>
    %14 = arith.addf %11, %13 : vector<16x128xf32>
    %cst_10 = arith.constant 0.000000e+00 : f32
    %15 = vector.broadcast %cst_10 : f32 to vector<16x128xf32>
    %16 = arith.maximumf %14, %15 : vector<16x128xf32>
    %c48 = arith.constant 48 : index
    %c0_11 = arith.constant 0 : index
    %17 = vector.load %arg4[%c48, %c0_11] : memref<72x1xf32, #tpu.memory_space<vmem>>, vector<16x1xf32>
    %c64 = arith.constant 64 : index
    %c0_12 = arith.constant 0 : index
    %18 = vector.load %arg4[%c64, %c0_12] : memref<72x1xf32, #tpu.memory_space<vmem>>, vector<1x1xf32>
    %19 = vector.broadcast %17 : vector<16x1xf32> to vector<16x128xf32>
    %20 = arith.mulf %16, %19 : vector<16x128xf32>
    %cst_13 = arith.constant dense<0.000000e+00> : vector<128xf32>
    %21 = vector.multi_reduction <add>, %20, %cst_13 [0] : vector<16x128xf32> to vector<128xf32>
    %22 = vector.shape_cast %21 : vector<128xf32> to vector<1x128xf32>
    %23 = vector.broadcast %18 : vector<1x1xf32> to vector<1x128xf32>
    %24 = arith.addf %22, %23 : vector<1x128xf32>
    %25 = arith.negf %24 : vector<1x128xf32>
    %26 = math.exp %25 : vector<1x128xf32>
    %cst_14 = arith.constant 1.000000e+00 : f32
    %27 = vector.broadcast %cst_14 : f32 to vector<1x128xf32>
    %28 = arith.addf %27, %26 : vector<1x128xf32>
    %29 = arith.divf %27, %28 : vector<1x128xf32>
    %c0_15 = arith.constant 0 : index
    %c0_16 = arith.constant 0 : index
    %30 = vector.load %arg5[%c0_15, %c0_16] : memref<1x128xf32, #tpu.memory_space<vmem>>, vector<1x128xf32>
    tpu.vector_store %arg5[%c0_15, %c0_16], %29 {strides = array<i32>} : memref<1x128xf32, #tpu.memory_space<vmem>>, vector<1x128xf32>,
    return
  }
  func.func @transform_0(%arg0: i32) -> (i32, i32) {
    %c0_i32 = arith.constant 0 : i32
    %c0_i32_0 = arith.constant 0 : i32
    return %arg0, %c0_i32 : i32, i32
  }
  func.func @transform_1(%arg0: i32) -> (i32, i32) {
    %c0_i32 = arith.constant 0 : i32
    %c0_i32_0 = arith.constant 0 : i32
    %c0_i32_1 = arith.constant 0 : i32
    return %c0_i32, %c0_i32_0 : i32, i32
  }
  func.func @transform_2(%arg0: i32) -> (i32, i32) {
    %c0_i32 = arith.constant 0 : i32
    %c0_i32_0 = arith.constant 0 : i32
    %c0_i32_1 = arith.constant 0 : i32
    return %c0_i32, %c0_i32_0 : i32, i32
  }
  func.func @transform_3(%arg0: i32) -> (i32, i32) {
    %c0_i32 = arith.constant 0 : i32
    %c0_i32_0 = arith.constant 0 : i32
    %c0_i32_1 = arith.constant 0 : i32
    return %c0_i32, %c0_i32_0 : i32, i32
  }
  func.func @transform_4(%arg0: i32) -> (i32, i32) {
    %c0_i32 = arith.constant 0 : i32
    %c0_i32_0 = arith.constant 0 : i32
    return %c0_i32, %arg0 : i32, i32
  }
}

</mosaic_0001>

<llo_original>
// kernel: tpu_custom_call.1
$region0: #{tpu_custom_call.1}
  #allocation0 [shape = 'u32[]', space=smem, size = 0x4, offset = 0x4, fixed_abs, tag = 'smem constant byte address 0x4 - core index']
  #allocation1 [shape = 'u32[72,128]{1,0:T(1,128)}', space=vmem, size = 0x9000, scoped, tag = 'internal scratch']
  %s0 = inlined_call_operand.vmem [shape: f32[256,64], index: 0, kind: input, shape index: {}]
  %s1 = inlined_call_operand.vmem [shape: bf16[32,64], index: 1, kind: input, shape index: {}]
  %s2 = inlined_call_operand.vmem [shape: bf16[16,32], index: 2, kind: input, shape index: {}]
  %s3 = inlined_call_operand.vmem [shape: f32[72,1], index: 3, kind: input, shape index: {}]
  %s4 = inlined_call_operand.hbm [shape: f32[1,256], index: 4, kind: output, shape index: {}]
  %s5 = sld [smem:[#allocation0]]
  $region49: #{tpu_custom_call.1} parent=0
    _
  %s7 = ssub.s32 1, %s5
  %s8 = scalar_select 0, %s7, %s5
  $region1: #{tpu_custom_call.1} parent=0
    #allocation2 [shape = 'u8[1024]{0}', space=vmem, size = 0x400, scoped, tag = 'output window, operand 0']
    #allocation3 [shape = 's32[2]{0}', space=sflag, size = 0x8, scoped, tag = 'scoped memory for tpu_custom_call.1']
    %9 = vsyncpa [#allocation3], 0
    %s10 = scalar_lea.sflag [#allocation3], 1
    %11 = vsyncpa %s10, 0
    loop: start=0, step=1, limit=4
    $region2: #{tpu_custom_call.1} parent=1 // loop_pre_header
      _
    $region3: #{tpu_custom_call.1} parent=1 // loop_header
      %s13 = sphi 0, %s17
      %p14 = scmp.ge.s32.totalorder %s13, 4
      %s23 = sphi 0, %s25
      %s26 = sphi 0, %s23
      %s27 = sphi 0, %s26
      %s43 = sphi 0, %s27
      %s47 = sphi 0, %s47
      %s49 = sphi 0, %s47
      %s50 = sphi 0, %s49
      %s64 = sphi 0, %s50
      %s68 = sphi 0, %s68
      %s70 = sphi 0, %s68
      %s71 = sphi 0, %s70
      %s85 = sphi 0, %s71
      %s89 = sphi 0, %s89
      %s91 = sphi 0, %s89
      %s92 = sphi 0, %s91
      %s106 = sphi 0, %s92
      %s112 = sphi 0, %s114
      %s115 = sphi 0, %s112
      %s116 = sphi 0, %s115
      %s132 = sphi 0, %s116
    $region4: #{tpu_custom_call.1} parent=1 // loop_header_branch
      %16 = sbr.rel (%p14) target = $region8
    $region5: #{tpu_custom_call.1} parent=1 // loop_body
      %s18 = ssub.s32 %s13, 1
      %s19 = ssub.s32 %s13, 2
      %s20 = sadd.s32 %s13, 1
      %s21 = ssub.s32 %s13, %s20
      %p22 = scmp.eq.s32.totalorder %s21, 0
      %s24 = sadd.s32 %s23, 1
      %s25 = scalar_select %p22, %s23, %s24
      %p28 = pneg %p22
      %p29 = scmp.eq.s32.totalorder %s13, 1
      %p30 = por %p28, %p29
      %p31 = scmp.ne.s32.totalorder %s23, %s26
      %p32 = scmp.eq.s32.totalorder %s13, 0
      %p33 = por %p31, %p32
      %p34 = scmp.ne.s32.totalorder %s23, %s26
      %p35 = scmp.eq.s32.totalorder %s18, 1
      %p36 = por %p34, %p35
      %p37 = scmp.ne.s32.totalorder %s26, %s27
      %p38 = scmp.eq.s32.totalorder %s18, 0
      %p39 = por %p37, %p38
      %p40 = scmp.ne.s32.totalorder %s26, %s27
      %p41 = scmp.eq.s32.totalorder %s19, 1
      %p42 = por %p40, %p41
      %p44 = scmp.ne.s32.totalorder %s27, %s43
      %p45 = scmp.eq.s32.totalorder %s19, 0
      %p46 = por %p44, %p45
      %s48 = sadd.s32 %s47, 1
      %p51 = scmp.eq.s32.totalorder %s13, 1
      %p52 = scmp.ne.s32.totalorder %s47, %s49
      %p53 = scmp.eq.s32.totalorder %s13, 0
      %p54 = por %p52, %p53
      %p55 = scmp.ne.s32.totalorder %s47, %s49
      %p56 = scmp.eq.s32.totalorder %s18, 1
      %p57 = por %p55, %p56
      %p58 = scmp.ne.s32.totalorder %s49, %s50
      %p59 = scmp.eq.s32.totalorder %s18, 0
      %p60 = por %p58, %p59
      %p61 = scmp.ne.s32.totalorder %s49, %s50
      %p62 = scmp.eq.s32.totalorder %s19, 1
      %p63 = por %p61, %p62
      %p65 = scmp.ne.s32.totalorder %s50, %s64
      %p66 = scmp.eq.s32.totalorder %s19, 0
      %p67 = por %p65, %p66
      %s69 = sadd.s32 %s68, 1
      %p72 = scmp.eq.s32.totalorder %s13, 1
      %p73 = scmp.ne.s32.totalorder %s68, %s70
      %p74 = scmp.eq.s32.totalorder %s13, 0
      %p75 = por %p73, %p74
      %p76 = scmp.ne.s32.totalorder %s68, %s70
      %p77 = scmp.eq.s32.totalorder %s18, 1
      %p78 = por %p76, %p77
      %p79 = scmp.ne.s32.totalorder %s70, %s71
      %p80 = scmp.eq.s32.totalorder %s18, 0
      %p81 = por %p79, %p80
      %p82 = scmp.ne.s32.totalorder %s70, %s71
      %p83 = scmp.eq.s32.totalorder %s19, 1
      %p84 = por %p82, %p83
      %p86 = scmp.ne.s32.totalorder %s71, %s85
      %p87 = scmp.eq.s32.totalorder %s19, 0
      %p88 = por %p86, %p87
      %s90 = sadd.s32 %s89, 1
      %p93 = scmp.eq.s32.totalorder %s13, 1
      %p94 = scmp.ne.s32.totalorder %s89, %s91
      %p95 = scmp.eq.s32.totalorder %s13, 0
      %p96 = por %p94, %p95
      %p97 = scmp.ne.s32.totalorder %s89, %s91
      %p98 = scmp.eq.s32.totalorder %s18, 1
      %p99 = por %p97, %p98
      %p100 = scmp.ne.s32.totalorder %s91, %s92
      %p101 = scmp.eq.s32.totalorder %s18, 0
      %p102 = por %p100, %p101
      %p103 = scmp.ne.s32.totalorder %s91, %s92
      %p104 = scmp.eq.s32.totalorder %s19, 1
      %p105 = por %p103, %p104
      %p107 = scmp.ne.s32.totalorder %s92, %s106
      %p108 = scmp.eq.s32.totalorder %s19, 0
      %p109 = por %p107, %p108
      %s110 = ssub.s32 %s13, %s20
      %p111 = scmp.eq.s32.totalorder %s110, 0
      %s113 = sadd.s32 %s112, 1
      %s114 = scalar_select %p111, %s112, %s113
      %p117 = pneg %p111
      %p118 = scmp.eq.s32.totalorder %s13, 1
      %p119 = por %p117, %p118
      %p120 = scmp.ne.s32.totalorder %s112, %s115
      %p121 = scmp.eq.s32.totalorder %s13, 0
      %p122 = por %p120, %p121
      %p123 = scmp.ne.s32.totalorder %s112, %s115
      %p124 = scmp.eq.s32.totalorder %s18, 1
      %p125 = por %p123, %p124
      %p126 = scmp.ne.s32.totalorder %s115, %s116
      %p127 = scmp.eq.s32.totalorder %s18, 0
      %p128 = por %p126, %p127
      %p129 = scmp.ne.s32.totalorder %s115, %s116
      %p130 = scmp.eq.s32.totalorder %s19, 1
      %p131 = por %p129, %p130
      %p133 = scmp.ne.s32.totalorder %s116, %s132
      %p134 = scmp.eq.s32.totalorder %s19, 0
      %p135 = por %p133, %p134
      %p136 = scmp.le.s32.totalorder 1, %s13
      %p137 = scmp.lt.s32.totalorder %s13, 3
      %p138 = pnand %p136, %p137
      %p139 = pneg %p138
      // Predicated region
      $region9: #{tpu_custom_call.1} parent=5 // pred_check
        _
      $region10: #{tpu_custom_call.1} parent=5 // pred_check_branch
        %141 = sbr.rel (%p138) target = $region12
      $region11: #{tpu_custom_call.1} parent=5 // pred_region
        %s142 = ssub.s32 %s13, 1
        // Predicated region
        $region13: #{tpu_custom_call.1} parent=11 // pred_check
          %p143 = pneg %p60
        $region14: #{tpu_custom_call.1} parent=11 // pred_check_branch
          %145 = sbr.rel (%p143) target = $region16
        $region15: #{tpu_custom_call.1} parent=11 // pred_region
          _
        $region16: #{tpu_custom_call.1} parent=11 // pred_fallthru
          _
        // Predicated region
        $region17: #{tpu_custom_call.1} parent=11 // pred_check
          %p146 = pneg %p81
        $region18: #{tpu_custom_call.1} parent=11 // pred_check_branch
          %148 = sbr.rel (%p146) target = $region20
        $region19: #{tpu_custom_call.1} parent=11 // pred_region
          _
        $region20: #{tpu_custom_call.1} parent=11 // pred_fallthru
          _
        // Predicated region
        $region21: #{tpu_custom_call.1} parent=11 // pred_check
          %p149 = pneg %p102
        $region22: #{tpu_custom_call.1} parent=11 // pred_check_branch
          %151 = sbr.rel (%p149) target = $region24
        $region23: #{tpu_custom_call.1} parent=11 // pred_region
          _
        $region24: #{tpu_custom_call.1} parent=11 // pred_fallthru
          _
      $region12: #{tpu_custom_call.1} parent=5 // pred_fallthru
        _
      %p152 = scmp.lt.s32.totalorder %s13, 2
      // Predicated region
      $region25: #{tpu_custom_call.1} parent=5 // pred_check
        %p153 = pneg %p152
      $region26: #{tpu_custom_call.1} parent=5 // pred_check_branch
        %155 = sbr.rel (%p153) target = $region28
      $region27: #{tpu_custom_call.1} parent=5 // pred_region
        // Predicated region
        $region29: #{tpu_custom_call.1} parent=27 // pred_check
          %p156 = pneg %p33
        $region30: #{tpu_custom_call.1} parent=27 // pred_check_branch
          %158 = sbr.rel (%p156) target = $region32
        $region31: #{tpu_custom_call.1} parent=27 // pred_region
          %s159 = smul.u32 16, %s13
          %p160 = scmp.lt.s32.totalorder %s159, 31
          %s161 = scalar_select %p160, %s159, 31
          %s162 = smul.addr %s161, 8
          %s163 = scalar_lea.vmem %s0, %s162
          %s164 = smul.u32 16, %s13
        $region32: #{tpu_custom_call.1} parent=27 // pred_fallthru
          _
      $region28: #{tpu_custom_call.1} parent=5 // pred_fallthru
        _
      %p165 = scmp.le.s32.totalorder 1, %s13
      %p166 = scmp.lt.s32.totalorder %s13, 3
      %p167 = pnand %p165, %p166
      %p168 = pneg %p167
      // Predicated region
      $region33: #{tpu_custom_call.1} parent=5 // pred_check
        _
      $region34: #{tpu_custom_call.1} parent=5 // pred_check_branch
        %170 = sbr.rel (%p167) target = $region36
      $region35: #{tpu_custom_call.1} parent=5 // pred_region
        %s171 = ssub.s32 %s13, 1
        %s172 = smul.u32 16, %s18
        %p173 = scmp.lt.s32.totalorder %s172, 31
        %s174 = scalar_select %p173, %s172, 31
        %s175 = smul.addr %s174, 8
        %s176 = scalar_lea.vmem %s0, %s175
        %p177 = pneg %p39
        %p178 = pneg %p36
        %p179 = pneg %p60
        %p180 = pneg %p57
        %p181 = pneg %p81
        %p182 = pneg %p78
        %p183 = pneg %p102
        %p184 = pneg %p99
        %p185 = pneg %p128
        %p186 = pneg %p125
        %s187 = sand.u32 %s115, 1
        %s188 = scalar_lea.sflag [#allocation3], %s187
        %s189 = sand.u32 %s115, 1
        %s190 = scalar_lea.vmem [#allocation2], %s189
        %s191 = smul.u32 16, %s18
        %p192 = scmp.lt.s32.totalorder %s191, 31
        %s193 = scalar_select %p192, %s191, 31
        %s194 = smul.addr %s193, 8
        %s195 = scalar_lea.vmem %s0, %s194
        %s196 = smul.u32 16, %s18
        %v198 = vld [vmem:[%s195] sm:$0xff]
        %v199 = vld [vmem:[%s195 + $0x8] sm:$0xff]
        %v200 = vld [vmem:[%s195 + $0x10] sm:$0xff]
        %v201 = vld [vmem:[%s195 + $0x18] sm:$0xff]
        %v202 = vld [vmem:[%s195 + $0x20] sm:$0xff]
        %v203 = vld [vmem:[%s195 + $0x28] sm:$0xff]
        %v204 = vld [vmem:[%s195 + $0x30] sm:$0xff]
        %v205 = vld [vmem:[%s195 + $0x38] sm:$0xff]
        %v206 = vld [vmem:[%s195 + $0x40] sm:$0xff]
        %v207 = vld [vmem:[%s195 + $0x48] sm:$0xff]
        %v208 = vld [vmem:[%s195 + $0x50] sm:$0xff]
        %v209 = vld [vmem:[%s195 + $0x58] sm:$0xff]
        %v210 = vld [vmem:[%s195 + $0x60] sm:$0xff]
        %v211 = vld [vmem:[%s195 + $0x68] sm:$0xff]
        %v212 = vld [vmem:[%s195 + $0x70] sm:$0xff]
        %v213 = vld [vmem:[%s195 + $0x78] sm:$0xff]
        %v214 = vpack.c.bf16 %v199, %v198
        %v215 = vpack.c.bf16 %v201, %v200
        %v216 = vpack.c.bf16 %v203, %v202
        %v217 = vpack.c.bf16 %v205, %v204
        %v218 = vpack.c.bf16 %v207, %v206
        %v219 = vpack.c.bf16 %v209, %v208
        %v220 = vpack.c.bf16 %v211, %v210
        %v221 = vpack.c.bf16 %v213, %v212
        %v222 = vld [vmem:[%s1] sm:$0xf]
        %v223 = vld [vmem:[%s1 + $0x4] sm:$0xf]
        %v224 = vld [vmem:[%s1 + $0x8] sm:$0xf]
        %v225 = vld [vmem:[%s1 + $0xc] sm:$0xf]
        %v226 = vld [vmem:[%s3] sm:$0xff]
        %v227 = vld [vmem:[%s3 + $0x8] sm:$0xff]
        %v228 = vld [vmem:[%s3 + $0x10] sm:$0xff]
        %v229 = vld [vmem:[%s3 + $0x18] sm:$0xff]
        %231 = vset.pattern.permute.xlu0 0
        %232 = vperm.xlu0 %231, %v226
        %v233 = vpop.permute.xlu0 %232
        %236 = vset.pattern.permute.xlu0 0
        %237 = vperm.xlu0 %236, %v227
        %v238 = vpop.permute.xlu0 %237
        %241 = vset.pattern.permute.xlu0 0
        %242 = vperm.xlu0 %241, %v228
        %v243 = vpop.permute.xlu0 %242
        %246 = vset.pattern.permute.xlu0 0
        %247 = vperm.xlu0 %246, %v229
        %v248 = vpop.permute.xlu0 %247
        %v254 = vunpack.c.l.b16 %v222
        %v255 = vunpack.c.l.b16 %v223
        %v256 = vunpack.c.l.b16 %v224
        %v257 = vunpack.c.l.b16 %v225
        %v258 = vpack.c.b16 %v255, %v254
        %v259 = vpack.c.b16 %v257, %v256
        %vm260 = vcmask 523264
        %v262 = vsel %vm260, %v258, 0
        %v265 = vsel %vm260, %v259, 0
        %v268 = vsel %vm260, %v214, 0
        %v271 = vsel %vm260, %v215, 0
        %v274 = vsel %vm260, %v216, 0
        %v277 = vsel %vm260, %v217, 0
        %v280 = vsel %vm260, %v218, 0
        %v283 = vsel %vm260, %v219, 0
        %v286 = vsel %vm260, %v220, 0
        %v289 = vsel %vm260, %v221, 0
        %291 = vmatpush.bf16.xpose.msra.mxu0 %v289
        %292 = vmatpush.bf16.xpose.msra.mxu0 %v286
        %293 = vmatpush.bf16.xpose.msra.mxu0 %v283
        %294 = vmatpush.bf16.xpose.msra.mxu0 %v280
        %295 = vmatpush.bf16.xpose.msra.mxu0 %v277
        %296 = vmatpush.bf16.xpose.msra.mxu0 %v274
        %297 = vmatpush.bf16.xpose.msra.mxu0 %v271
        %298 = vmatpush.bf16.xpose.msra.mxu0 %v268
        %299 = vmatmul.bf16.gmra.mxu0 %v262
        %v300 = vpop.f32.mrf.mxu0
        %v301 = vadd.f32 %v233, %v300
        %v302 = vpop.f32.mrf.mxu0
        %v303 = vadd.f32 %v238, %v302
        %304 = vmatmul.bf16.gmra.mxu0 %v265
        %v305 = vpop.f32.mrf.mxu0
        %v306 = vadd.f32 %v243, %v305
        %v307 = vpop.f32.mrf.mxu0
        %v308 = vadd.f32 %v248, %v307
        %309 = vdwg.mxu0
        %v310 = vmax.f32 %v301, 0.0
        %v311 = vmax.f32 %v303, 0.0
        %v312 = vmax.f32 %v306, 0.0
        %v313 = vmax.f32 %v308, 0.0
        %v314 = vld [vmem:[%s2] sm:$0xf]
        %v315 = vld [vmem:[%s2 + $0x4] sm:$0xf]
        %v316 = vpack.c.bf16 %v311, %v310
        %v317 = vpack.c.bf16 %v313, %v312
        %v318 = vld [vmem:[%s3 + $0x20] sm:$0xff]
        %v319 = vld [vmem:[%s3 + $0x28] sm:$0xff]
        %321 = vset.pattern.permute.xlu0 0
        %322 = vperm.xlu0 %321, %v318
        %v323 = vpop.permute.xlu0 %322
        %326 = vset.pattern.permute.xlu0 0
        %327 = vperm.xlu0 %326, %v319
        %v328 = vpop.permute.xlu0 %327
        %v332 = vunpack.c.l.b16 %v314
        %v333 = vunpack.c.l.b16 %v315
        %v334 = vpack.c.b16 %v333, %v332
        %vm335 = vcmask 261120
        %v337 = vsel %vm335, %v334, 0
        %339 = vmatpush.bf16.msra.mxu0 0
        %340 = vmatpush.bf16.msra.mxu0 0
        %341 = vmatpush.bf16.msra.mxu0 0
        %342 = vmatpush.bf16.msra.mxu0 0
        %343 = vmatpush.bf16.msra.mxu0 0
        %344 = vmatpush.bf16.msra.mxu0 0
        %345 = vmatpush.bf16.msra.mxu0 %v317
        %346 = vmatpush.bf16.msra.mxu0 %v316
        %347 = vmatmul.bf16.gmra.mxu0 %v337
        %v348 = vpop.f32.mrf.mxu0
        %v349 = vadd.f32 %v323, %v348
        %v350 = vpop.f32.mrf.mxu0
        %v351 = vadd.f32 %v328, %v350
        %352 = vdwg.mxu0
        %v353 = vmax.f32 %v349, 0.0
        %v354 = vmax.f32 %v351, 0.0
        %v355 = vld [vmem:[%s3 + $0x30] sm:$0xff]
        %v356 = vld [vmem:[%s3 + $0x38] sm:$0xff]
        %v357 = vld [vmem:[%s3 + $0x40] sm:$0x1]
        %359 = vset.pattern.permute.xlu0 0
        %360 = vperm.xlu0 %359, %v355
        %v361 = vpop.permute.xlu0 %360
        %364 = vset.pattern.permute.xlu0 0
        %365 = vperm.xlu0 %364, %v356
        %v366 = vpop.permute.xlu0 %365
        %v368 = vmul.f32 %v353, %v361
        %v369 = vmul.f32 %v354, %v366
        %v370 = vadd.f32 %v368, %v369
        %v371 = vrot.slane %v370, 4
        %v372 = vadd.f32 %v370, %v371
        %v373 = vrot.slane %v372, 2
        %v374 = vadd.f32 %v372, %v373
        %v375 = vrot.slane %v374, 1
        %v376 = vadd.f32 %v374, %v375
        %378 = vset.pattern.permute.xlu0 0
        %379 = vperm.xlu0 %378, %v357
        %v380 = vpop.permute.xlu0 %379
        %v382 = vadd.f32 %v376, %v380
        %v383 = vxor.u32 %v382, 2147483648
        %v384 = vmul.f32 %v383, 1.442695
        %v385 = vpow.pop %v384
        %v386 = vadd.f32 %v385, 1.0
        %v387 = vrcp.pop %v386
        %v388 = vmul.f32 %v386, %v387
        %v389 = vsub.f32 1.0, %v388
        %v390 = vmul.f32 %v387, %v389
        %v391 = vadd.f32 %v387, %v390
        %vm392 = vweird.f32 %v386
        %vm393 = vweird.f32 %v387
        %vm394 = vmor %vm392, %vm393
        %v395 = vsel %vm394, %v387, %v391
        %v396 = vand.u32 2147483647, %v386
        %vm397 = vcmp.eq.f32.partialorder %v396, 8.507059e+37
        %v398 = vand.u32 %v386, 2147483648
        %v399 = vor.u32 1.1754944e-38, %v398
        %v400 = vsel %vm397, %v399, %v395
        %v401 = vmul.f32 1.0, %v400
        %402 = vst [vmem:[%s190] sm:$0x1] %v401
        %s403 = sand.u32 %s115, 1
        %s404 = scalar_lea.sflag [#allocation3], %s403
        %s405 = sand.u32 %s115, 1
        %s406 = scalar_lea.vmem [#allocation2], %s405
        // Predicated region
        $region37: #{tpu_custom_call.1} parent=35 // pred_check
          %p407 = pneg %p125
        $region38: #{tpu_custom_call.1} parent=35 // pred_check_branch
          %409 = sbr.rel (%p407) target = $region40
        $region39: #{tpu_custom_call.1} parent=35 // pred_region
          %411 = vsyncadd %s404, 0
          %s412 = scalar_lea.hbm %s4, %s18
          %s414 = sshll.u32 %s406, 4
          %s415 = int_to_ptr.vmem [resolvable:$true] %s414
          %s416 = sshll.u32 %s412, 4
          %s417 = int_to_ptr.hbm [resolvable:$true] %s416
          %419 = dma.vmem_to_hbm [thread:$0]  %s415, 16, %s417, %s404
        $region40: #{tpu_custom_call.1} parent=35 // pred_fallthru
          _
      $region36: #{tpu_custom_call.1} parent=5 // pred_fallthru
        _
      %p420 = scmp.le.s32.totalorder 2, %s13
      // Predicated region
      $region41: #{tpu_custom_call.1} parent=5 // pred_check
        %p421 = pneg %p420
      $region42: #{tpu_custom_call.1} parent=5 // pred_check_branch
        %423 = sbr.rel (%p421) target = $region44
      $region43: #{tpu_custom_call.1} parent=5 // pred_region
        %s424 = ssub.s32 %s13, 2
        // Predicated region
        $region45: #{tpu_custom_call.1} parent=43 // pred_check
          %p425 = pneg %p131
        $region46: #{tpu_custom_call.1} parent=43 // pred_check_branch
          %427 = sbr.rel (%p425) target = $region48
        $region47: #{tpu_custom_call.1} parent=43 // pred_region
          %s428 = sand.u32 %s116, 1
          %s429 = scalar_lea.sflag [#allocation3], %s428
          %s430 = sand.u32 %s116, 1
          %s431 = scalar_lea.vmem [#allocation2], %s430
          %433 = dma.done %s429, 16
        $region48: #{tpu_custom_call.1} parent=43 // pred_fallthru
          _
      $region44: #{tpu_custom_call.1} parent=5 // pred_fallthru
        _
    $region6: #{tpu_custom_call.1} parent=1 // loop_footer
      %s17 = sadd.s32 1, %s13
    $region7: #{tpu_custom_call.1} parent=1 // loop_footer_branch
      %12 = sbr.rel target = $region3
    $region8: #{tpu_custom_call.1} parent=1 // loop_exit
      _
    %434 = vsyncpa [#allocation3], 1
    %s435 = scalar_lea.sflag [#allocation3], 1
    %436 = vsyncpa %s435, 1

</llo_original>
